<compile_context>
chip_gen: v6e
topology: v6e:2x2x1
jax: 0.10.0
libtpu: 0.0.40
codegen_flags: <defaults>
</compile_context>

<pallas_src>
import functools

import jax
import jax.numpy as jnp
from jax.experimental import pallas as pl
from jax.experimental.pallas import tpu as pltpu


def _triplet_loss_kernel(a_ref, p_ref, n_ref, out_ref, *, margin, batch, tile_b):
    i = pl.program_id(0)

    # Init the resident (1,1) accumulator on the first tile.
    @pl.when(i == 0)
    def _():
        out_ref[...] = jnp.zeros_like(out_ref)

    a = a_ref[...].astype(jnp.float32)
    p = p_ref[...].astype(jnp.float32)
    n = n_ref[...].astype(jnp.float32)

    dp = a - p
    dn = a - n
    # ||.||_2 along the feature (lane) axis; zero-padded lanes contribute 0.
    pos_dist = jnp.sqrt(jnp.sum(dp * dp, axis=1, keepdims=True))  # (TB, 1)
    neg_dist = jnp.sqrt(jnp.sum(dn * dn, axis=1, keepdims=True))  # (TB, 1)

    hinge = jnp.maximum(pos_dist - neg_dist + margin, 0.0)        # (TB, 1)

    # Mask out zero-padded remainder rows (their hinge would be `margin`).
    row = jax.lax.broadcasted_iota(jnp.int32, (tile_b, 1), 0) + i * tile_b
    hinge = jnp.where(row < batch, hinge, 0.0)

    # Per-tile partial sum only; the mean's divide happens once at the end.
    out_ref[...] += jnp.sum(hinge)

    @pl.when(i == pl.num_programs(0) - 1)
    def _():
        out_ref[...] = out_ref[...] * (1.0 / batch)


def triplet_loss(anchor, positive, negative, margin=1.0):
    """Pallas TPU implementation of TripletLoss.forward (p=2 norm over dim=1)."""
    assert anchor.shape == positive.shape == negative.shape
    assert anchor.ndim == 2, "expected (batch, features) inputs"
    b, d = anchor.shape
    itemsize = jnp.dtype(anchor.dtype).itemsize

    # Lane-dense feature axis: pad D up to a multiple of 128.
    d_pad = pl.cdiv(d, 128) * 128

    # Batch tile: largest multiple of 8 such that 3 inputs x 2 pipeline
    # buffers fit a ~24 MiB budget (safe on v5e/v6e/v7x), capped at 1024 rows
    # (per-grid-step overhead is already well amortized there).
    budget = 24 * 1024 * 1024
    bytes_per_row = 3 * 2 * d_pad * itemsize          # double-buffered inputs
    tb = max(8, min(1024, (budget // bytes_per_row) // 8 * 8))
    tb = min(tb, pl.cdiv(b, 8) * 8)                   # don't exceed padded batch
    b_pad = pl.cdiv(b, tb) * tb
    grid = b_pad // tb

    def _pad(x):
        return jnp.pad(x, ((0, b_pad - b), (0, d_pad - d)))

    a, p, n = _pad(anchor), _pad(positive), _pad(negative)

    # Raise the scoped-VMEM limit above v5e's 16 MiB default; stays well under
    # v7x's 64 MiB physical VMEM.
    vmem_need = 3 * 2 * tb * d_pad * itemsize
    vmem_limit = min(48 * 1024 * 1024, vmem_need + (4 * 1024 * 1024))

    kernel = functools.partial(
        _triplet_loss_kernel, margin=float(margin), batch=b, tile_b=tb
    )

    in_spec = pl.BlockSpec((tb, d_pad), lambda i: (i, 0))
    # NOTE: default 2-deep buffering kept (pl.Buffered(3) only if profiling
    # shows exposed DMA, and only where the extra tile still fits VMEM).
    out = pl.pallas_call(
        kernel,
        out_shape=jax.ShapeDtypeStruct((1, 1), jnp.float32),
        grid_spec=pltpu.PrefetchScalarGridSpec(
            num_scalar_prefetch=0,
            grid=(grid,),
            in_specs=[in_spec, in_spec, in_spec],
            out_specs=pl.BlockSpec((1, 1), lambda i: (0, 0)),
        ),
        compiler_params=pltpu.CompilerParams(
            dimension_semantics=("arbitrary",),   # reduction axis (accumulator)
            vmem_limit_bytes=int(vmem_limit),
        ),
    )(a, p, n)
    return out[0, 0]


def _reference(anchor, positive, negative, margin=1.0):
    pos = jnp.linalg.norm(anchor - positive, axis=1)
    neg = jnp.linalg.norm(anchor - negative, axis=1)
    return jnp.mean(jnp.maximum(pos - neg + margin, 0.0))


if __name__ == "__main__":
    key = jax.random.PRNGKey(0)
    k_a, k_p, k_n = jax.random.split(key, 3)

    B, D = 8, 32  # small shapes: batch=8, hidden=32 (launch-overhead bound;
                  # the tiling pays off at realistic B x D)
    anchor = jax.random.normal(k_a, (B, D), dtype=jnp.float32)
    positive = jax.random.normal(k_p, (B, D), dtype=jnp.float32)
    negative = jax.random.normal(k_n, (B, D), dtype=jnp.float32)

    loss = triplet_loss(anchor, positive, negative, margin=1.0)
    jax.block_until_ready(loss)

    ref = _reference(anchor, positive, negative, margin=1.0)
    assert jnp.allclose(loss, ref, atol=1e-5, rtol=1e-5), (loss, ref)

    print("KERNEL_OK")
</pallas_src>

<mosaic_0001>
module attributes {stable_mosaic.version = 11 : i64} {
  func.func @_triplet_loss_kernel(%arg0: i32, %arg1: memref<8x128xf32, #tpu.memory_space<vmem>>, %arg2: memref<8x128xf32, #tpu.memory_space<vmem>>, %arg3: memref<8x128xf32, #tpu.memory_space<vmem>>, %arg4: memref<1x1xf32, #tpu.memory_space<vmem>>) attributes {dimension_semantics = [#tpu.dimension_semantics<arbitrary>], iteration_bounds = array<i64: 1>, scalar_prefetch = 0 : i64, scratch_operands = 0 : i64, tpu.core_type = #tpu.core_type<tc>, window_params = [{transform_indices = @transform_0, window_bounds = array<i64: 8, 128>}, {transform_indices = @transform_1, window_bounds = array<i64: 8, 128>}, {transform_indices = @transform_2, window_bounds = array<i64: 8, 128>}, {pipeline_mode = #tpu.pipeline_mode<synchronous>, transform_indices = @transform_3, window_bounds = array<i64: 1, 1>}]} {
    %c0_i32 = arith.constant 0 : i32
    %0 = arith.cmpi eq, %arg0, %c0_i32 : i32
    %1 = arith.extui %0 : i1 to i32
    %c0_i32_0 = arith.constant 0 : i32
    %2 = arith.cmpi ne, %1, %c0_i32_0 : i32
    scf.if %2 {
      %cst_18 = arith.constant 0.000000e+00 : f32
      %40 = vector.broadcast %cst_18 : f32 to vector<1x1xf32>
      %c0_19 = arith.constant 0 : index
      %c0_20 = arith.constant 0 : index
      %41 = vector.load %arg4[%c0_19, %c0_20] : memref<1x1xf32, #tpu.memory_space<vmem>>, vector<1x1xf32>
      tpu.vector_store %arg4[%c0_19, %c0_20], %40 {strides = array<i32>} : memref<1x1xf32, #tpu.memory_space<vmem>>, vector<1x1xf32>,
    } else {
    }
    %c0 = arith.constant 0 : index
    %c0_1 = arith.constant 0 : index
    %3 = vector.load %arg1[%c0, %c0_1] : memref<8x128xf32, #tpu.memory_space<vmem>>, vector<8x128xf32>
    %c0_2 = arith.constant 0 : index
    %c0_3 = arith.constant 0 : index
    %4 = vector.load %arg2[%c0_2, %c0_3] : memref<8x128xf32, #tpu.memory_space<vmem>>, vector<8x128xf32>
    %c0_4 = arith.constant 0 : index
    %c0_5 = arith.constant 0 : index
    %5 = vector.load %arg3[%c0_4, %c0_5] : memref<8x128xf32, #tpu.memory_space<vmem>>, vector<8x128xf32>
    %6 = arith.subf %3, %4 : vector<8x128xf32>
    %7 = arith.subf %3, %5 : vector<8x128xf32>
    %8 = arith.mulf %6, %6 : vector<8x128xf32>
    %cst = arith.constant dense<0.000000e+00> : vector<8xf32>
    %9 = vector.multi_reduction <add>, %8, %cst [1] : vector<8x128xf32> to vector<8xf32>
    %10 = vector.shape_cast %9 : vector<8xf32> to vector<8x1xf32>
    %11 = math.sqrt %10 : vector<8x1xf32>
    %12 = arith.mulf %7, %7 : vector<8x128xf32>
    %cst_6 = arith.constant dense<0.000000e+00> : vector<8xf32>
    %13 = vector.multi_reduction <add>, %12, %cst_6 [1] : vector<8x128xf32> to vector<8xf32>
    %14 = vector.shape_cast %13 : vector<8xf32> to vector<8x1xf32>
    %15 = math.sqrt %14 : vector<8x1xf32>
    %16 = arith.subf %11, %15 : vector<8x1xf32>
    %cst_7 = arith.constant 1.000000e+00 : f32
    %17 = vector.broadcast %cst_7 : f32 to vector<8x1xf32>
    %18 = arith.addf %16, %17 : vector<8x1xf32>
    %cst_8 = arith.constant 0.000000e+00 : f32
    %19 = vector.broadcast %cst_8 : f32 to vector<8x1xf32>
    %20 = arith.maximumf %18, %19 : vector<8x1xf32>
    %21 = tpu.iota {dimensions = array<i32: 0>} : vector<8x1xi32>
    %c8_i32 = arith.constant 8 : i32
    %22 = arith.muli %arg0, %c8_i32 : i32
    %23 = vector.broadcast %22 : i32 to vector<8x1xi32>
    %24 = arith.addi %21, %23 : vector<8x1xi32>
    %c8_i32_9 = arith.constant 8 : i32
    %25 = vector.broadcast %c8_i32_9 : i32 to vector<8x1xi32>
    %26 = arith.cmpi slt, %24, %25 : vector<8x1xi32>
    %cst_10 = arith.constant 0.000000e+00 : f32
    %27 = vector.broadcast %cst_10 : f32 to vector<8x1xf32>
    %28 = arith.select %26, %20, %27 : vector<8x1xi1>, vector<8x1xf32>
    %c0_11 = arith.constant 0 : index
    %c0_12 = arith.constant 0 : index
    %29 = vector.load %arg4[%c0_11, %c0_12] : memref<1x1xf32, #tpu.memory_space<vmem>>, vector<1x1xf32>
    %30 = vector.shape_cast %28 : vector<8x1xf32> to vector<1x8x1xf32>
    %cst_13 = arith.constant dense<0.000000e+00> : vector<1xf32>
    %31 = vector.multi_reduction <add>, %30, %cst_13 [1, 2] : vector<1x8x1xf32> to vector<1xf32>
    %32 = vector.shape_cast %31 : vector<1xf32> to vector<1x1x1xf32>
    %33 = vector.extract %32[0, 0, 0] : f32 from vector<1x1x1xf32>
    %34 = vector.broadcast %33 : f32 to vector<1x1xf32>
    %35 = arith.addf %29, %34 : vector<1x1xf32>
    %c0_14 = arith.constant 0 : index
    %c0_15 = arith.constant 0 : index
    %36 = vector.load %arg4[%c0_14, %c0_15] : memref<1x1xf32, #tpu.memory_space<vmem>>, vector<1x1xf32>
    tpu.vector_store %arg4[%c0_14, %c0_15], %35 {strides = array<i32>} : memref<1x1xf32, #tpu.memory_space<vmem>>, vector<1x1xf32>,
    %c0_i32_16 = arith.constant 0 : i32
    %37 = arith.cmpi eq, %arg0, %c0_i32_16 : i32
    %38 = arith.extui %37 : i1 to i32
    %c0_i32_17 = arith.constant 0 : i32
    %39 = arith.cmpi ne, %38, %c0_i32_17 : i32
    scf.if %39 {
      %c0_18 = arith.constant 0 : index
      %c0_19 = arith.constant 0 : index
      %40 = vector.load %arg4[%c0_18, %c0_19] : memref<1x1xf32, #tpu.memory_space<vmem>>, vector<1x1xf32>
      %cst_20 = arith.constant 1.250000e-01 : f32
      %41 = vector.broadcast %cst_20 : f32 to vector<1x1xf32>
      %42 = arith.mulf %40, %41 : vector<1x1xf32>
      %c0_21 = arith.constant 0 : index
      %c0_22 = arith.constant 0 : index
      %43 = vector.load %arg4[%c0_21, %c0_22] : memref<1x1xf32, #tpu.memory_space<vmem>>, vector<1x1xf32>
      tpu.vector_store %arg4[%c0_21, %c0_22], %42 {strides = array<i32>} : memref<1x1xf32, #tpu.memory_space<vmem>>, vector<1x1xf32>,
    } else {
    }
    return
  }
  func.func @transform_0(%arg0: i32) -> (i32, i32) {
    %c0_i32 = arith.constant 0 : i32
    %c0_i32_0 = arith.constant 0 : i32
    return %arg0, %c0_i32 : i32, i32
  }
  func.func @transform_1(%arg0: i32) -> (i32, i32) {
    %c0_i32 = arith.constant 0 : i32
    %c0_i32_0 = arith.constant 0 : i32
    return %arg0, %c0_i32 : i32, i32
  }
  func.func @transform_2(%arg0: i32) -> (i32, i32) {
    %c0_i32 = arith.constant 0 : i32
    %c0_i32_0 = arith.constant 0 : i32
    return %arg0, %c0_i32 : i32, i32
  }
  func.func @transform_3(%arg0: i32) -> (i32, i32) {
    %c0_i32 = arith.constant 0 : i32
    %c0_i32_0 = arith.constant 0 : i32
    %c0_i32_1 = arith.constant 0 : i32
    return %c0_i32, %c0_i32_0 : i32, i32
  }
}

</mosaic_0001>

<llo_original>
// kernel: tpu_custom_call.1
$region0: #{tpu_custom_call.1}
  #allocation0 [shape = 'u32[]', space=smem, size = 0x4, offset = 0x4, fixed_abs, tag = 'smem constant byte address 0x4 - core index']
  #allocation1 [shape = 'u32[144,128]{1,0:T(1,128)}', space=vmem, size = 0x12000, scoped, tag = 'internal scratch']
  %s0 = inlined_call_operand.hbm [shape: f32[8,128], index: 0, kind: input, shape index: {}]
  %s1 = inlined_call_operand.hbm [shape: f32[8,128], index: 1, kind: input, shape index: {}]
  %s2 = inlined_call_operand.hbm [shape: f32[8,128], index: 2, kind: input, shape index: {}]
  %s3 = inlined_call_operand.hbm [shape: f32[1,1], index: 3, kind: output, shape index: {}]
  %s4 = sld [smem:[#allocation0]]
  $region42: #{tpu_custom_call.1} parent=0
    _
  %s6 = ssub.s32 1, %s4
  %s7 = scalar_select 0, %s6, %s4
  $region1: #{tpu_custom_call.1} parent=0
    #allocation2 [shape = 'u8[4096]{0}', space=vmem, size = 0x1000, scoped, tag = 'input window, operand 0, single buffered']
    #allocation3 [shape = 's32[1]{0}', space=sflag, size = 0x4, scoped, tag = 'scoped memory for tpu_custom_call.1']
    #allocation4 [shape = 's32[1]{0}', space=sflag, size = 0x4, scoped, tag = 'scoped memory for tpu_custom_call.1']
    #allocation5 [shape = 'u8[4096]{0}', space=vmem, size = 0x1000, scoped, tag = 'input window, operand 1, single buffered']
    #allocation6 [shape = 's32[1]{0}', space=sflag, size = 0x4, scoped, tag = 'scoped memory for tpu_custom_call.1']
    #allocation7 [shape = 'u8[4096]{0}', space=vmem, size = 0x1000, scoped, tag = 'input window, operand 2, single buffered']
    #allocation8 [shape = 'u8[512]{0}', space=vmem, size = 0x400, scoped, tag = 'output window, operand 0, single buffered']
    %8 = vsyncpa [#allocation3], 0
    %9 = vsyncpa [#allocation6], 0
    %10 = vsyncpa [#allocation4], 0
    // Predicated region
    $region2: #{tpu_custom_call.1} parent=1 // pred_check
      _
    $region3: #{tpu_custom_call.1} parent=1 // pred_check_branch
      %12 = sbr.rel (0) target = $region5
    $region4: #{tpu_custom_call.1} parent=1 // pred_region
      %s14 = ssub.s32 128, 128
      %15 = vsyncadd [#allocation3], %s14
      %s17 = sshll.u32 [#allocation2], 4
      %s18 = int_to_ptr.vmem [resolvable:$true] %s17
      %20 = dma.hbm_to_vmem [thread:$0]  %s0, 128, %s18, [#allocation3]
    $region5: #{tpu_custom_call.1} parent=1 // pred_fallthru
      _
    // Predicated region
    $region6: #{tpu_custom_call.1} parent=1 // pred_check
      _
    $region7: #{tpu_custom_call.1} parent=1 // pred_check_branch
      %22 = sbr.rel (0) target = $region9
    $region8: #{tpu_custom_call.1} parent=1 // pred_region
      %s24 = ssub.s32 128, 128
      %25 = vsyncadd [#allocation6], %s24
      %s27 = sshll.u32 [#allocation5], 4
      %s28 = int_to_ptr.vmem [resolvable:$true] %s27
      %30 = dma.hbm_to_vmem [thread:$0]  %s1, 128, %s28, [#allocation6]
    $region9: #{tpu_custom_call.1} parent=1 // pred_fallthru
      _
    // Predicated region
    $region10: #{tpu_custom_call.1} parent=1 // pred_check
      _
    $region11: #{tpu_custom_call.1} parent=1 // pred_check_branch
      %32 = sbr.rel (0) target = $region13
    $region12: #{tpu_custom_call.1} parent=1 // pred_region
      %s34 = ssub.s32 128, 128
      %35 = vsyncadd [#allocation6], %s34
      %s37 = sshll.u32 [#allocation7], 4
      %s38 = int_to_ptr.vmem [resolvable:$true] %s37
      %40 = dma.hbm_to_vmem [thread:$0]  %s2, 128, %s38, [#allocation6]
    $region13: #{tpu_custom_call.1} parent=1 // pred_fallthru
      _
    // Predicated region
    $region14: #{tpu_custom_call.1} parent=1 // pred_check
      _
    $region15: #{tpu_custom_call.1} parent=1 // pred_check_branch
      %42 = sbr.rel (0) target = $region17
    $region16: #{tpu_custom_call.1} parent=1 // pred_region
      %43 = dma.done [#allocation3], 128
    $region17: #{tpu_custom_call.1} parent=1 // pred_fallthru
      _
    // Predicated region
    $region18: #{tpu_custom_call.1} parent=1 // pred_check
      _
    $region19: #{tpu_custom_call.1} parent=1 // pred_check_branch
      %45 = sbr.rel (0) target = $region21
    $region20: #{tpu_custom_call.1} parent=1 // pred_region
      %46 = dma.done [#allocation6], 128
    $region21: #{tpu_custom_call.1} parent=1 // pred_fallthru
      _
    // Predicated region
    $region22: #{tpu_custom_call.1} parent=1 // pred_check
      _
    $region23: #{tpu_custom_call.1} parent=1 // pred_check_branch
      %48 = sbr.rel (0) target = $region25
    $region24: #{tpu_custom_call.1} parent=1 // pred_region
      %49 = dma.done [#allocation6], 128
    $region25: #{tpu_custom_call.1} parent=1 // pred_fallthru
      _
    %p50 = scmp.eq.s32.totalorder 0, 0
    // Predicated region
    $region26: #{tpu_custom_call.1} parent=1 // pred_check
      %p51 = pneg %p50
    $region27: #{tpu_custom_call.1} parent=1 // pred_check_branch
      %53 = sbr.rel (%p51) target = $region29
    $region28: #{tpu_custom_call.1} parent=1 // pred_region
      %vm54 = vcmask 0
      %55 = vst.msk [vmem:[#allocation8] sm:$0x1] %vm54, 0.0
    $region29: #{tpu_custom_call.1} parent=1 // pred_fallthru
      _
    %v56 = vld [vmem:[#allocation2] sm:$0xff]
    %v57 = vld [vmem:[#allocation5] sm:$0xff]
    %v58 = vld [vmem:[#allocation7] sm:$0xff]
    %v59 = vsub.f32 %v56, %v57
    %v60 = vsub.f32 %v56, %v58
    %v61 = vmul.f32 %v59, %v59
    %62 = vadd.xlane.f32.xlu0 %v61
    %v63 = vpop.xlane.xlu0 %62
    %v64 = vrsqrt.pop %v63
    %v65 = vmul.f32 %v63, %v64
    %vm66 = vcmp.eq.f32.partialorder %v63, inf
    %v67 = vsel %vm66, %v63, %v65
    %vm68 = vcmp.eq.f32.partialorder %v63, 0.0
    %v69 = vand.u32 %v63, 2147483648
    %v70 = vsel %vm68, %v69, %v67
    %v71 = vmul.f32 %v60, %v60
    %72 = vadd.xlane.f32.xlu0 %v71
    %v73 = vpop.xlane.xlu0 %72
    %v74 = vrsqrt.pop %v73
    %v75 = vmul.f32 %v73, %v74
    %vm76 = vcmp.eq.f32.partialorder %v73, inf
    %v77 = vsel %vm76, %v73, %v75
    %vm78 = vcmp.eq.f32.partialorder %v73, 0.0
    %v79 = vand.u32 %v73, 2147483648
    %v80 = vsel %vm78, %v79, %v77
    %v81 = vsub.f32 %v70, %v80
    %v82 = vadd.f32 %v81, 1.0
    %v83 = vmax.f32 %v82, 0.0
    %v84 = vlaneseq
    %v85 = vshrl.u32 %v84, 7
    %s86 = smul.u32 0, 8
    %v87 = vstv %s86
    %v88 = vadd.s32 %v85, %v87
    %vm89 = vcmp.lt.s32.totalorder %v88, 8
    %v90 = vsel %vm89, %v83, 0.0
    %v91 = vld [vmem:[#allocation8] sm:$0x1]
    %vm92 = vcmask 7168
    %v93 = vsel %vm92, %v90, 0.0
    %94 = vadd.xlane.f32.xlu0 %v93
    %v95 = vpop.xlane.xlu0 %94
    %v96 = vrot.slane %v95, 4
    %v97 = vadd.f32 %v95, %v96
    %v98 = vrot.slane %v97, 2
    %v99 = vadd.f32 %v97, %v98
    %v100 = vrot.slane %v99, 1
    %v101 = vadd.f32 %v99, %v100
    %s102 = vtos %v101
    %v103 = vstv %s102
    %v104 = vadd.f32 %v91, %v103
    %vm105 = vcmask 0
    %106 = vst.msk [vmem:[#allocation8] sm:$0x1] %vm105, %v104
    // Predicated region
    $region30: #{tpu_custom_call.1} parent=1 // pred_check
      %p107 = pneg %p50
    $region31: #{tpu_custom_call.1} parent=1 // pred_check_branch
      %109 = sbr.rel (%p107) target = $region33
    $region32: #{tpu_custom_call.1} parent=1 // pred_region
      %v110 = vld [vmem:[#allocation8] sm:$0x1]
      %v111 = vmul.f32 %v110, 0.125
      %112 = vst.msk [vmem:[#allocation8] sm:$0x1] %vm105, %v111
    $region33: #{tpu_custom_call.1} parent=1 // pred_fallthru
      _
    // Predicated region
    $region34: #{tpu_custom_call.1} parent=1 // pred_check
      _
    $region35: #{tpu_custom_call.1} parent=1 // pred_check_branch
      %114 = sbr.rel (0) target = $region37
    $region36: #{tpu_custom_call.1} parent=1 // pred_region
      %s116 = ssub.s32 16, 16
      %117 = vsyncadd [#allocation4], %s116
      %s119 = sshll.u32 [#allocation8], 4
      %s120 = int_to_ptr.vmem [resolvable:$true] %s119
      %122 = dma.vmem_to_hbm [thread:$0]  %s120, 16, %s3, [#allocation4]
    $region37: #{tpu_custom_call.1} parent=1 // pred_fallthru
      _
    // Predicated region
    $region38: #{tpu_custom_call.1} parent=1 // pred_check
      _
    $region39: #{tpu_custom_call.1} parent=1 // pred_check_branch
      %124 = sbr.rel (0) target = $region41
    $region40: #{tpu_custom_call.1} parent=1 // pred_region
      %125 = dma.done [#allocation4], 16
    $region41: #{tpu_custom_call.1} parent=1 // pred_fallthru
      _
    %126 = vsyncpa [#allocation3], 1
    %127 = vsyncpa [#allocation6], 1
    %128 = vsyncpa [#allocation4], 1

</llo_original>
